<compile_context>
chip_gen: v7x
topology: tpu7x:2x2x1
jax: 0.10.0
libtpu: 0.0.40
codegen_flags: <defaults>
</compile_context>

<pallas_src>
import functools
import math

import jax
import jax.numpy as jnp
from jax.experimental import pallas as pl
from jax.experimental.pallas import tpu as pltpu

_LANES = 128
_SUBLANES = 8


def _layernorm_kernel(x_ref, g_ref, b_ref, o_ref, *, eps: float, dim: int):
    # Hoisted parameter loads + casts: (1, D), reused for the whole tile.
    g = g_ref[...].astype(jnp.float32)
    b = b_ref[...].astype(jnp.float32)

    x = x_ref[...].astype(jnp.float32)                       # (TR, D)

    mean = jnp.sum(x, axis=-1, keepdims=True) * (1.0 / dim)  # (TR, 1)
    diff = x - mean

    # torch.Tensor.std default is unbiased: divide by (N - 1).
    # (dim == 1 is degenerate — torch would give NaN; guard the Python divide.)
    var = jnp.sum(diff * diff, axis=-1, keepdims=True) * (1.0 / max(dim - 1, 1))
    std = jnp.sqrt(var)

    # 1 / (std + eps): EUP approximate reciprocal + one Newton step instead of
    # a full VPU divide sequence.
    s = std + eps
    r = pl.reciprocal(s, approx=True)
    r = r * (2.0 - s * r)

    o_ref[...] = (g * (diff * r) + b).astype(o_ref.dtype)


def _vmem_capacity_bytes() -> int:
    """Best-effort query of per-core VMEM; conservative fallback (v7x = 64 MiB)."""
    try:
        info = pltpu.get_tpu_info()
        cap = int(getattr(info, "vmem_capacity_bytes", 0))
        if cap > 0:
            return cap
    except Exception:
        pass
    return 64 * 1024 * 1024


def _choose_tile_rows(rows: int, dim: int, itemsize: int, vmem_cap: int) -> int:
    # Budget ~60% of VMEM for the pipeline working set, capped at 96 MiB
    # (v7x: ~38 MiB of its 64 MiB; v5e/v6e: ~77 MiB of 128 MiB).
    budget = int(min(0.6 * vmem_cap, 96 * 1024 * 1024))
    # Per row: double-buffered input + output tiles, plus ~4 f32 temporaries.
    bytes_per_row = dim * (4 * itemsize + 16)
    tr = max(_SUBLANES, (budget // max(bytes_per_row, 1)) // _SUBLANES * _SUBLANES)

    if tr >= rows:
        return rows  # single block spanning all rows (block == full array dim is OK)

    # Keep at least ~4 grid steps when the problem is big enough, so the
    # 'parallel' axis can be split across v7x's two TensorCores.
    min_steps = 4
    if rows >= min_steps * _SUBLANES:
        cap_tr = max(_SUBLANES, (rows // min_steps) // _SUBLANES * _SUBLANES)
        tr = min(tr, cap_tr)
    return tr


def layer_norm(z: jax.Array, gamma: jax.Array, beta: jax.Array,
               eps: float = 1e-6, tile_rows: int | None = None) -> jax.Array:
    """Applies kospeech LayerNorm over the last axis of z."""
    orig_shape = z.shape
    dim = orig_shape[-1]
    rows = math.prod(orig_shape[:-1]) if len(orig_shape) > 1 else 1

    x2d = z.reshape(rows, dim)
    g2d = gamma.reshape(1, dim)
    b2d = beta.reshape(1, dim)

    vmem_cap = _vmem_capacity_bytes()
    itemsize = jnp.dtype(z.dtype).itemsize
    if tile_rows is None:
        tr = _choose_tile_rows(rows, dim, itemsize, vmem_cap)
    else:
        tr = min(tile_rows, rows)
        if tr < rows:
            tr = max(_SUBLANES, tr // _SUBLANES * _SUBLANES)

    grid = (pl.cdiv(rows, tr),)

    # Raise the scoped VMEM limit (defaults of 16/32 MiB would reject big tiles).
    vmem_limit = int(min(0.8 * vmem_cap, 112 * 1024 * 1024))

    kernel = functools.partial(_layernorm_kernel, eps=eps, dim=dim)

    out = pl.pallas_call(
        kernel,
        out_shape=jax.ShapeDtypeStruct((rows, dim), z.dtype),
        grid_spec=pltpu.PrefetchScalarGridSpec(
            num_scalar_prefetch=0,
            grid=grid,
            in_specs=[
                pl.BlockSpec((tr, dim), lambda i: (i, 0)),
                pl.BlockSpec((1, dim), lambda i: (0, 0)),
                pl.BlockSpec((1, dim), lambda i: (0, 0)),
            ],
            out_specs=pl.BlockSpec((tr, dim), lambda i: (i, 0)),
        ),
        compiler_params=pltpu.CompilerParams(
            dimension_semantics=("parallel",),
            vmem_limit_bytes=vmem_limit,
        ),
    )(x2d, g2d, b2d)

    return out.reshape(orig_shape)


if __name__ == "__main__":
    key = jax.random.PRNGKey(0)
    batch, seq, dim = 2, 8, 32

    # Deterministic parameter init per the module's __init__:
    gamma = jnp.ones((dim,), dtype=jnp.float32)   # torch.ones(dim)
    beta = jnp.zeros((dim,), dtype=jnp.float32)   # torch.zeros(dim)

    z = jax.random.normal(key, (batch, seq, dim), dtype=jnp.float32)

    out = layer_norm(z, gamma, beta, eps=1e-6)
    jax.block_until_ready(out)

    # Pure-JAX reference (unbiased std, std + eps in the denominator).
    mean = jnp.mean(z, axis=-1, keepdims=True)
    std = jnp.sqrt(jnp.sum((z - mean) ** 2, axis=-1, keepdims=True) / (dim - 1))
    ref = gamma * ((z - mean) / (std + 1e-6)) + beta
    assert out.shape == z.shape
    assert jnp.allclose(out, ref, atol=1e-4, rtol=1e-4), "mismatch vs reference"

    print("KERNEL_OK")
</pallas_src>

<mosaic_0001>
module attributes {stable_mosaic.version = 11 : i64} {
  func.func @_layernorm_kernel(%arg0: i32, %arg1: memref<16x32xf32, #tpu.memory_space<vmem>>, %arg2: memref<1x32xf32, #tpu.memory_space<vmem>>, %arg3: memref<1x32xf32, #tpu.memory_space<vmem>>, %arg4: memref<16x32xf32, #tpu.memory_space<vmem>>) attributes {dimension_semantics = [#tpu.dimension_semantics<parallel>], iteration_bounds = array<i64: 1>, scalar_prefetch = 0 : i64, scratch_operands = 0 : i64, tpu.core_type = #tpu.core_type<tc>, window_params = [{transform_indices = @transform_0, window_bounds = array<i64: 16, 32>}, {pipeline_mode = #tpu.pipeline_mode<synchronous>, transform_indices = @transform_1, window_bounds = array<i64: 1, 32>}, {pipeline_mode = #tpu.pipeline_mode<synchronous>, transform_indices = @transform_2, window_bounds = array<i64: 1, 32>}, {transform_indices = @transform_3, window_bounds = array<i64: 16, 32>}]} {
    %c0 = arith.constant 0 : index
    %c0_0 = arith.constant 0 : index
    %0 = vector.load %arg2[%c0, %c0_0] : memref<1x32xf32, #tpu.memory_space<vmem>>, vector<1x32xf32>
    %c0_1 = arith.constant 0 : index
    %c0_2 = arith.constant 0 : index
    %1 = vector.load %arg3[%c0_1, %c0_2] : memref<1x32xf32, #tpu.memory_space<vmem>>, vector<1x32xf32>
    %c0_3 = arith.constant 0 : index
    %c0_4 = arith.constant 0 : index
    %2 = vector.load %arg1[%c0_3, %c0_4] : memref<16x32xf32, #tpu.memory_space<vmem>>, vector<16x32xf32>
    %cst = arith.constant dense<0.000000e+00> : vector<16xf32>
    %3 = vector.multi_reduction <add>, %2, %cst [1] : vector<16x32xf32> to vector<16xf32>
    %4 = vector.shape_cast %3 : vector<16xf32> to vector<16x1xf32>
    %cst_5 = arith.constant 3.125000e-02 : f32
    %5 = vector.broadcast %cst_5 : f32 to vector<16x1xf32>
    %6 = arith.mulf %4, %5 : vector<16x1xf32>
    %7 = vector.broadcast %6 : vector<16x1xf32> to vector<16x32xf32>
    %8 = arith.subf %2, %7 : vector<16x32xf32>
    %9 = arith.mulf %8, %8 : vector<16x32xf32>
    %cst_6 = arith.constant dense<0.000000e+00> : vector<16xf32>
    %10 = vector.multi_reduction <add>, %9, %cst_6 [1] : vector<16x32xf32> to vector<16xf32>
    %11 = vector.shape_cast %10 : vector<16xf32> to vector<16x1xf32>
    %cst_7 = arith.constant 0.0322580636 : f32
    %12 = vector.broadcast %cst_7 : f32 to vector<16x1xf32>
    %13 = arith.mulf %11, %12 : vector<16x1xf32>
    %14 = math.sqrt %13 : vector<16x1xf32>
    %cst_8 = arith.constant 9.99999997E-7 : f32
    %15 = vector.broadcast %cst_8 : f32 to vector<16x1xf32>
    %16 = arith.addf %14, %15 : vector<16x1xf32>
    %17 = tpu.reciprocal %16 {approx = true} : vector<16x1xf32> -> vector<16x1xf32>
    %18 = arith.mulf %16, %17 : vector<16x1xf32>
    %cst_9 = arith.constant 2.000000e+00 : f32
    %19 = vector.broadcast %cst_9 : f32 to vector<16x1xf32>
    %20 = arith.subf %19, %18 : vector<16x1xf32>
    %21 = arith.mulf %17, %20 : vector<16x1xf32>
    %22 = vector.broadcast %21 : vector<16x1xf32> to vector<16x32xf32>
    %23 = arith.mulf %8, %22 : vector<16x32xf32>
    %24 = vector.broadcast %0 : vector<1x32xf32> to vector<16x32xf32>
    %25 = arith.mulf %24, %23 : vector<16x32xf32>
    %26 = vector.broadcast %1 : vector<1x32xf32> to vector<16x32xf32>
    %27 = arith.addf %25, %26 : vector<16x32xf32>
    %c0_10 = arith.constant 0 : index
    %c0_11 = arith.constant 0 : index
    %28 = vector.load %arg4[%c0_10, %c0_11] : memref<16x32xf32, #tpu.memory_space<vmem>>, vector<16x32xf32>
    tpu.vector_store %arg4[%c0_10, %c0_11], %27 {strides = array<i32>} : memref<16x32xf32, #tpu.memory_space<vmem>>, vector<16x32xf32>,
    return
  }
  func.func @transform_0(%arg0: i32) -> (i32, i32) {
    %c0_i32 = arith.constant 0 : i32
    %c0_i32_0 = arith.constant 0 : i32
    return %arg0, %c0_i32 : i32, i32
  }
  func.func @transform_1(%arg0: i32) -> (i32, i32) {
    %c0_i32 = arith.constant 0 : i32
    %c0_i32_0 = arith.constant 0 : i32
    %c0_i32_1 = arith.constant 0 : i32
    return %c0_i32, %c0_i32_0 : i32, i32
  }
  func.func @transform_2(%arg0: i32) -> (i32, i32) {
    %c0_i32 = arith.constant 0 : i32
    %c0_i32_0 = arith.constant 0 : i32
    %c0_i32_1 = arith.constant 0 : i32
    return %c0_i32, %c0_i32_0 : i32, i32
  }
  func.func @transform_3(%arg0: i32) -> (i32, i32) {
    %c0_i32 = arith.constant 0 : i32
    %c0_i32_0 = arith.constant 0 : i32
    return %arg0, %c0_i32 : i32, i32
  }
}

</mosaic_0001>

<llo_original>
// kernel: tpu_custom_call.1
$region0: #{tpu_custom_call.1}
  #allocation0 [shape = 'u32[]', space=smem, size = 0x4, offset = 0x4, fixed_abs, tag = 'smem constant byte address 0x4 - core index']
  #allocation1 [shape = 'u32[144,128]{1,0:T(1,128)}', space=vmem, size = 0x12000, scoped, tag = 'internal scratch']
  %s0 = inlined_call_operand.hbm [shape: f32[16,32], index: 0, kind: input, shape index: {}]
  %s1 = inlined_call_operand.vmem [shape: f32[1,32], index: 1, kind: input, shape index: {}]
  %s2 = inlined_call_operand.vmem [shape: f32[1,32], index: 2, kind: input, shape index: {}]
  %s3 = inlined_call_operand.hbm [shape: f32[16,32], index: 3, kind: output, shape index: {}]
  %s4 = sld [smem:[#allocation0]]
  $region26: #{tpu_custom_call.1} parent=0
    _
  %s6 = ssub.s32 1, %s4
  %s7 = scalar_select 0, %s6, %s4
  $region1: #{tpu_custom_call.1} parent=0
    #allocation2 [shape = 'u8[8192]{0}', space=vmem, size = 0x2000, scoped, tag = 'input window, operand 0, single buffered']
    #allocation3 [shape = 's32[1]{0}', space=sflag, size = 0x4, scoped, tag = 'scoped memory for tpu_custom_call.1']
    #allocation4 [shape = 's32[1]{0}', space=sflag, size = 0x4, scoped, tag = 'scoped memory for tpu_custom_call.1']
    #allocation5 [shape = 'u8[8192]{0}', space=vmem, size = 0x2000, scoped, tag = 'output window, operand 0, single buffered']
    %8 = vsyncpa [#allocation3], 0
    %9 = vsyncpa [#allocation4], 0
    // Predicated region
    $region2: #{tpu_custom_call.1} parent=1 // pred_check
      _
    $region3: #{tpu_custom_call.1} parent=1 // pred_check_branch
      %11 = sbr.rel (0) target = $region5
    $region4: #{tpu_custom_call.1} parent=1 // pred_region
      %s13 = ssub.s32 256, 256
      %14 = vsyncadd [#allocation3], %s13
      %s15 = sshll.u32 [#allocation2], 4
      %s16 = int_to_ptr.vmem [resolvable:$true] %s15
      %21 = dma.hbm_to_vmem [thread:$0]  %s0, 256, %s16, [#allocation3], 128, 128, 8
    $region5: #{tpu_custom_call.1} parent=1 // pred_fallthru
      _
    // Predicated region
    $region6: #{tpu_custom_call.1} parent=1 // pred_check
      _
    $region7: #{tpu_custom_call.1} parent=1 // pred_check_branch
      %23 = sbr.rel (0) target = $region9
    $region8: #{tpu_custom_call.1} parent=1 // pred_region
      _
    $region9: #{tpu_custom_call.1} parent=1 // pred_fallthru
      _
    // Predicated region
    $region10: #{tpu_custom_call.1} parent=1 // pred_check
      _
    $region11: #{tpu_custom_call.1} parent=1 // pred_check_branch
      %25 = sbr.rel (0) target = $region13
    $region12: #{tpu_custom_call.1} parent=1 // pred_region
      _
    $region13: #{tpu_custom_call.1} parent=1 // pred_fallthru
      _
    // Predicated region
    $region14: #{tpu_custom_call.1} parent=1 // pred_check
      _
    $region15: #{tpu_custom_call.1} parent=1 // pred_check_branch
      %27 = sbr.rel (0) target = $region17
    $region16: #{tpu_custom_call.1} parent=1 // pred_region
      %28 = dma.done [#allocation3], 256
    $region17: #{tpu_custom_call.1} parent=1 // pred_fallthru
      _
    %v29 = vld [vmem:[%s1] sm:$0x1]
    %v30 = vld [vmem:[%s2] sm:$0x1]
    %v31 = vld [vmem:[#allocation2] sm:$0xff]
    %v32 = vld [vmem:[#allocation2 + $0x8] sm:$0xff]
    %vm33 = vcmask 261120
    %v34 = vsel %vm33, %v31, 0.0
    %35 = vadd.xlane.f32.xlu0 %v34
    %v36 = vpop.xlane.xlu0 %35
    %v37 = vsel %vm33, %v32, 0.0
    %38 = vadd.xlane.f32.xlu0 %v37
    %v39 = vpop.xlane.xlu0 %38
    %v40 = vmul.f32 %v36, 0.03125
    %v41 = vmul.f32 %v39, 0.03125
    %v42 = vsub.f32 %v31, %v40
    %v43 = vsub.f32 %v32, %v41
    %v44 = vmul.f32 %v42, %v42
    %v45 = vmul.f32 %v43, %v43
    %v46 = vsel %vm33, %v44, 0.0
    %47 = vadd.xlane.f32.xlu0 %v46
    %v48 = vpop.xlane.xlu0 %47
    %v49 = vsel %vm33, %v45, 0.0
    %50 = vadd.xlane.f32.xlu0 %v49
    %v51 = vpop.xlane.xlu0 %50
    %v52 = vmul.f32 %v48, 0.032258064
    %v53 = vmul.f32 %v51, 0.032258064
    %v54 = vrsqrt.pop %v52
    %v55 = vmul.f32 %v52, %v54
    %vm56 = vcmp.eq.f32.partialorder %v52, inf
    %v57 = vsel %vm56, %v52, %v55
    %vm58 = vcmp.eq.f32.partialorder %v52, 0.0
    %v59 = vand.u32 %v52, 2147483648
    %v60 = vsel %vm58, %v59, %v57
    %v61 = vrsqrt.pop %v53
    %v62 = vmul.f32 %v53, %v61
    %vm63 = vcmp.eq.f32.partialorder %v53, inf
    %v64 = vsel %vm63, %v53, %v62
    %vm65 = vcmp.eq.f32.partialorder %v53, 0.0
    %v66 = vand.u32 %v53, 2147483648
    %v67 = vsel %vm65, %v66, %v64
    %v68 = vadd.f32 %v60, 1e-06
    %v69 = vadd.f32 %v67, 1e-06
    %v70 = vrcp.pop %v68
    %v71 = vrcp.pop %v69
    %v72 = vmul.f32 %v68, %v70
    %v73 = vmul.f32 %v69, %v71
    %v74 = vsub.f32 2.0, %v72
    %v75 = vsub.f32 2.0, %v73
    %v76 = vmul.f32 %v70, %v74
    %v77 = vmul.f32 %v71, %v75
    %v78 = vmul.f32 %v42, %v76
    %v79 = vmul.f32 %v43, %v77
    %v81 = vlaneseq
    %v82 = vshrl.u32 %v81, 7
    %v83 = vsub.s32 0, %v82
    %v84 = vrot.slane %v29, %v83
    %v86 = vmul.f32 %v84, %v78
    %v87 = vmul.f32 %v84, %v79
    %v89 = vlaneseq
    %v90 = vshrl.u32 %v89, 7
    %v91 = vsub.s32 0, %v90
    %v92 = vrot.slane %v30, %v91
    %v94 = vadd.f32 %v86, %v92
    %v95 = vadd.f32 %v87, %v92
    %96 = vst.msk [vmem:[#allocation5] sm:$0xff] %vm33, %v94
    %97 = vst.msk [vmem:[#allocation5 + $0x8] sm:$0xff] %vm33, %v95
    // Predicated region
    $region18: #{tpu_custom_call.1} parent=1 // pred_check
      _
    $region19: #{tpu_custom_call.1} parent=1 // pred_check_branch
      %99 = sbr.rel (0) target = $region21
    $region20: #{tpu_custom_call.1} parent=1 // pred_region
      %s101 = ssub.s32 256, 256
      %102 = vsyncadd [#allocation4], %s101
      %s103 = sshll.u32 [#allocation5], 4
      %s104 = int_to_ptr.vmem [resolvable:$true] %s103
      %109 = dma.vmem_to_hbm [thread:$0]  %s104, 256, %s3, [#allocation4], 128, 128, 8
    $region21: #{tpu_custom_call.1} parent=1 // pred_fallthru
      _
    // Predicated region
    $region22: #{tpu_custom_call.1} parent=1 // pred_check
      _
    $region23: #{tpu_custom_call.1} parent=1 // pred_check_branch
      %111 = sbr.rel (0) target = $region25
    $region24: #{tpu_custom_call.1} parent=1 // pred_region
      %112 = dma.done [#allocation4], 256
    $region25: #{tpu_custom_call.1} parent=1 // pred_fallthru
      _
    %113 = vsyncpa [#allocation3], 1
    %114 = vsyncpa [#allocation4], 1

</llo_original>
